<compile_context>
chip_gen: v7x
topology: tpu7x:2x2x1
jax: 0.10.0
libtpu: 0.0.40
codegen_flags: <defaults>
</compile_context>

<pallas_src>
import jax
import jax.numpy as jnp
from jax.experimental import pallas as pl
from jax.experimental.pallas import tpu as pltpu

EPS = 1e-5
H1 = 12          # fc1 output width (fixed by the module)
H1P = 128        # lane-dense padded width of the fc1/bn1 feature axis


def _round_up(a, b):
    return (a + b - 1) // b * b


def _vmem_budget_bytes():
    """Generation-aware scoped-VMEM budget (~75% of physical VMEM)."""
    try:
        cap = int(pltpu.get_tpu_info().vmem_capacity_bytes)
    except Exception:
        cap = 64 * 1024 * 1024          # safe default (v7x physical)
    return max(16 * 1024 * 1024, (cap * 3) // 4)


def _pick_tile_n(n, h, o, vmem_budget_bytes):
    """Batch-tile rows: ~8 MiB for the widest per-step slab, cap 4096 rows,
    then shrink until the double-buffered working set fits the VMEM budget."""
    widest = max(h, o, H1P)
    tile = (8 * 1024 * 1024) // (4 * widest)
    tile = min(4096, max(8, (tile // 8) * 8))

    resident = 4 * (h * H1P + H1P * o + 2 * H1P + 2 * o + 2 * h)
    per_row = 4 * (2 * h + 2 * o + h + 2 * H1P)   # 2x-buffered x/out + interm.
    while tile > 8 and resident + tile * per_row > vmem_budget_bytes:
        tile = max(8, ((tile // 2) // 8) * 8)
    return min(tile, _round_up(n, 8))


# ----------------------------- forward ---------------------------------------

@jax.jit
def decoder_forward(x, params):
    """x: (N, hiddensize) -> (N, outputsize), float32."""
    N, H = x.shape
    O = params["w2"].shape[1]
    f32 = jnp.float32

    # ---- fold BN affine params (gamma/beta) into the adjacent Linears -------
    g0, b0 = params["g0"].astype(f32), params["b0"].astype(f32)     # (1, H)
    w1, bb1 = params["w1"].astype(f32), params["bb1"].astype(f32)   # (H,12),(1,12)
    g1, be1 = params["g1"].astype(f32), params["be1"].astype(f32)   # (1, 12)
    w2, bb2 = params["w2"].astype(f32), params["bb2"].astype(f32)   # (12,O),(1,O)

    w1f = w1 * g0.reshape(H, 1)                    # (H, 12)
    b1f = b0 @ w1 + bb1                            # (1, 12)
    w2f = w2 * g1.reshape(H1, 1)                   # (12, O)
    b2f = be1 @ w2 + bb2                           # (1, O)

    # lane-dense padding of the 12-wide hidden feature axis (12 -> 128);
    # padded h columns are exactly 0, so they never affect stats or output.
    w1f = jnp.pad(w1f, ((0, 0), (0, H1P - H1)))    # (H, 128)
    b1f = jnp.pad(b1f, ((0, 0), (0, H1P - H1)))    # (1, 128)
    w2f = jnp.pad(w2f, ((0, H1P - H1), (0, 0)))    # (128, O)

    # ---- batch tiling (no host-side pad of x, ragged last tile handled) -----
    budget = _vmem_budget_bytes()
    tile_n = _pick_tile_n(N, H, O, budget)
    num_tiles = pl.cdiv(N, tile_n)
    ragged = (N % tile_n) != 0
    inv_n = 1.0 / N

    # ---- kernel 1: fused stats pass ------------------------------------------
    # grid = (phase, batch-tile):
    #   phase 0: accumulate per-feature sum / sumsq of x          -> stats0
    #   phase 1: bn0-normalize + fc1' + tanh, accumulate h stats  -> stats1
    def stats_kernel(x_ref, w1_ref, b1_ref, s0_ref, s1_ref):
        p = pl.program_id(0)
        i = pl.program_id(1)

        @pl.when((p == 0) & (i == 0))
        def _init():
            s0_ref[...] = jnp.zeros_like(s0_ref)
            s1_ref[...] = jnp.zeros_like(s1_ref)

        x = x_ref[...].astype(jnp.float32)

        def accum(s_ref, v):
            def add(vm):
                s_ref[0:1, :] += jnp.sum(vm, axis=0, keepdims=True)
                s_ref[1:2, :] += jnp.sum(vm * vm, axis=0, keepdims=True)

            if not ragged:                       # trace-time decision
                add(v)
            else:
                last = num_tiles - 1

                @pl.when(i != last)              # full tiles: no masking work
                def _full():
                    add(v)

                @pl.when(i == last)              # ragged tile: mask OOB rows
                def _masked():
                    row = (jax.lax.broadcasted_iota(jnp.int32, (tile_n, 1), 0)
                           + i * tile_n)
                    add(jnp.where(row < N, v, 0.0))

        @pl.when(p == 0)
        def _phase0():
            accum(s0_ref, x)

        @pl.when(p == 1)
        def _phase1():
            mean0 = s0_ref[0:1, :] * inv_n
            var0 = jnp.maximum(s0_ref[1:2, :] * inv_n - mean0 * mean0, 0.0)
            rstd0 = jax.lax.rsqrt(var0 + EPS)
            h = jnp.tanh(
                jnp.dot((x - mean0) * rstd0, w1_ref[...],
                        preferred_element_type=jnp.float32) + b1_ref[...])
            accum(s1_ref, h)

    stats0, stats1 = pl.pallas_call(
        stats_kernel,
        grid=(2, num_tiles),
        in_specs=[pl.BlockSpec((tile_n, H), lambda p, i: (i, 0)),
                  pl.BlockSpec((H, H1P), lambda p, i: (0, 0)),
                  pl.BlockSpec((1, H1P), lambda p, i: (0, 0))],
        out_specs=[pl.BlockSpec((2, H), lambda p, i: (0, 0)),
                   pl.BlockSpec((2, H1P), lambda p, i: (0, 0))],
        out_shape=(jax.ShapeDtypeStruct((2, H), f32),
                   jax.ShapeDtypeStruct((2, H1P), f32)),
        compiler_params=pltpu.CompilerParams(
            dimension_semantics=("arbitrary", "arbitrary"),
            vmem_limit_bytes=budget),
        cost_estimate=pl.CostEstimate(
            flops=2 * N * H * H1P + 10 * N * H + 5 * N * H1P,
            transcendentals=N * H1P,
            bytes_accessed=4 * (2 * N * H + H * H1P + 3 * H1P + 2 * H)),
    )(x, w1f, b1f)

    # ---- fold the batch statistics into the Linear weights (tiny XLA ops) ---
    mean0 = stats0[0:1, :] * inv_n
    var0 = jnp.maximum(stats0[1:2, :] * inv_n - mean0 * mean0, 0.0)
    rstd0 = jax.lax.rsqrt(var0 + EPS)
    w1ff = w1f * rstd0.reshape(H, 1)               # (H, 128)
    b1ff = b1f - (mean0 * rstd0) @ w1f             # (1, 128)

    mean1 = stats1[0:1, :] * inv_n
    var1 = jnp.maximum(stats1[1:2, :] * inv_n - mean1 * mean1, 0.0)
    rstd1 = jax.lax.rsqrt(var1 + EPS)
    w2ff = w2f * rstd1.reshape(H1P, 1)             # (128, O)
    b2ff = b2f - (mean1 * rstd1) @ w2f             # (1, O)

    # ---- kernel 2: out = tanh(x @ W1' + b1') @ W2' + b2' ---------------------
    # (batch axis "parallel" -> megacore sharding on v7x; OOB rows of a ragged
    #  last tile only pollute their own output rows, which Pallas drops.)
    def apply_kernel(x_ref, w1_ref, b1_ref, w2_ref, b2_ref, o_ref):
        h = jnp.tanh(
            jnp.dot(x_ref[...].astype(jnp.float32), w1_ref[...],
                    preferred_element_type=jnp.float32) + b1_ref[...])
        o_ref[...] = (jnp.dot(h, w2_ref[...],
                              preferred_element_type=jnp.float32)
                      + b2_ref[...]).astype(o_ref.dtype)

    out = pl.pallas_call(
        apply_kernel,
        grid=(num_tiles,),
        in_specs=[pl.BlockSpec((tile_n, H), lambda i: (i, 0)),
                  pl.BlockSpec((H, H1P), lambda i: (0, 0)),
                  pl.BlockSpec((1, H1P), lambda i: (0, 0)),
                  pl.BlockSpec((H1P, O), lambda i: (0, 0)),
                  pl.BlockSpec((1, O), lambda i: (0, 0))],
        out_specs=pl.BlockSpec((tile_n, O), lambda i: (i, 0)),
        out_shape=jax.ShapeDtypeStruct((N, O), f32),
        compiler_params=pltpu.CompilerParams(
            dimension_semantics=("parallel",),
            vmem_limit_bytes=budget),
        cost_estimate=pl.CostEstimate(
            flops=2 * N * H1P * (H + O) + 2 * N * (H1P + O),
            transcendentals=N * H1P,
            bytes_accessed=4 * (N * H + N * O + H * H1P + H1P * O + H1P + O)),
    )(x, w1ff, b1ff, w2ff, b2ff)

    return out


# ----------------------------- params / reference -----------------------------

def init_params(key, hiddensize, outputsize):
    """Deterministic synthetic parameters matching the PyTorch module shapes."""
    k1, k2, k3, k4, k5, k6 = jax.random.split(key, 6)
    g0 = jax.random.uniform(k1, (1, hiddensize), jnp.float32, 0.5, 1.5)
    b0 = jax.random.normal(k2, (1, hiddensize), jnp.float32) * 0.1
    w1 = jax.random.normal(k3, (hiddensize, H1), jnp.float32) * 0.1   # (in, out)
    bb1 = jax.random.normal(k4, (1, H1), jnp.float32) * 0.1
    g1 = jax.random.uniform(k5, (1, H1), jnp.float32, 0.5, 1.5)
    be1 = jax.random.normal(k6, (1, H1), jnp.float32) * 0.1
    k7, k8 = jax.random.split(k1)
    w2 = jax.random.normal(k7, (H1, outputsize), jnp.float32) * 0.1
    bb2 = jax.random.normal(k8, (1, outputsize), jnp.float32) * 0.1
    return dict(g0=g0, b0=b0, w1=w1, bb1=bb1, g1=g1, be1=be1, w2=w2, bb2=bb2)


def decoder_reference(x, p):
    """Pure-JAX reference (unfolded, two-pass variance) for numerical check."""
    mean0 = jnp.mean(x, axis=0, keepdims=True)
    var0 = jnp.mean((x - mean0) ** 2, axis=0, keepdims=True)
    x0 = (x - mean0) / jnp.sqrt(var0 + EPS) * p["g0"] + p["b0"]
    h = jnp.tanh(x0 @ p["w1"] + p["bb1"])
    mean1 = jnp.mean(h, axis=0, keepdims=True)
    var1 = jnp.mean((h - mean1) ** 2, axis=0, keepdims=True)
    h1 = (h - mean1) / jnp.sqrt(var1 + EPS) * p["g1"] + p["be1"]
    return h1 @ p["w2"] + p["bb2"]


if __name__ == "__main__":
    batch = 8
    hiddensize = 32
    outputsize = 16

    key = jax.random.PRNGKey(0)
    kx, kp = jax.random.split(key)
    x = jax.random.normal(kx, (batch, hiddensize), jnp.float32)
    params = init_params(kp, hiddensize, outputsize)

    out = decoder_forward(x, params)
    out = jax.block_until_ready(out)

    ref = decoder_reference(x, params)
    assert out.shape == (batch, outputsize)
    assert jnp.allclose(out, ref, atol=2e-4, rtol=2e-4), "mismatch vs reference"

    print("KERNEL_OK")
</pallas_src>

<mosaic_0001>
module attributes {stable_mosaic.version = 11 : i64} {
  func.func @stats_kernel(%arg0: i32, %arg1: i32, %arg2: memref<8x32xf32, #tpu.memory_space<vmem>>, %arg3: memref<32x128xf32, #tpu.memory_space<vmem>>, %arg4: memref<1x128xf32, #tpu.memory_space<vmem>>, %arg5: memref<2x32xf32, #tpu.memory_space<vmem>>, %arg6: memref<2x128xf32, #tpu.memory_space<vmem>>) attributes {dimension_semantics = [#tpu.dimension_semantics<arbitrary>, #tpu.dimension_semantics<arbitrary>], iteration_bounds = array<i64: 2, 1>, scalar_prefetch = 0 : i64, scratch_operands = 0 : i64, tpu.core_type = #tpu.core_type<tc>, window_params = [{transform_indices = @transform_0, window_bounds = array<i64: 8, 32>}, {pipeline_mode = #tpu.pipeline_mode<synchronous>, transform_indices = @transform_1, window_bounds = array<i64: 32, 128>}, {pipeline_mode = #tpu.pipeline_mode<synchronous>, transform_indices = @transform_2, window_bounds = array<i64: 1, 128>}, {pipeline_mode = #tpu.pipeline_mode<synchronous>, transform_indices = @transform_3, window_bounds = array<i64: 2, 32>}, {pipeline_mode = #tpu.pipeline_mode<synchronous>, transform_indices = @transform_4, window_bounds = array<i64: 2, 128>}]} {
    %c0_i32 = arith.constant 0 : i32
    %0 = arith.cmpi eq, %arg0, %c0_i32 : i32
    %c0_i32_0 = arith.constant 0 : i32
    %1 = arith.cmpi eq, %arg1, %c0_i32_0 : i32
    %2 = arith.andi %0, %1 : i1
    %3 = arith.extui %2 : i1 to i32
    %c0_i32_1 = arith.constant 0 : i32
    %4 = arith.cmpi ne, %3, %c0_i32_1 : i32
    scf.if %4 {
      %cst = arith.constant 0.000000e+00 : f32
      %12 = vector.broadcast %cst : f32 to vector<2x32xf32>
      %c0_6 = arith.constant 0 : index
      %c0_7 = arith.constant 0 : index
      %13 = vector.load %arg5[%c0_6, %c0_7] : memref<2x32xf32, #tpu.memory_space<vmem>>, vector<2x32xf32>
      tpu.vector_store %arg5[%c0_6, %c0_7], %12 {strides = array<i32>} : memref<2x32xf32, #tpu.memory_space<vmem>>, vector<2x32xf32>,
      %cst_8 = arith.constant 0.000000e+00 : f32
      %14 = vector.broadcast %cst_8 : f32 to vector<2x128xf32>
      %c0_9 = arith.constant 0 : index
      %c0_10 = arith.constant 0 : index
      %15 = vector.load %arg6[%c0_9, %c0_10] : memref<2x128xf32, #tpu.memory_space<vmem>>, vector<2x128xf32>
      tpu.vector_store %arg6[%c0_9, %c0_10], %14 {strides = array<i32>} : memref<2x128xf32, #tpu.memory_space<vmem>>, vector<2x128xf32>,
    } else {
    }
    %c0 = arith.constant 0 : index
    %c0_2 = arith.constant 0 : index
    %5 = vector.load %arg2[%c0, %c0_2] : memref<8x32xf32, #tpu.memory_space<vmem>>, vector<8x32xf32>
    %c0_i32_3 = arith.constant 0 : i32
    %6 = arith.cmpi eq, %arg0, %c0_i32_3 : i32
    %7 = arith.extui %6 : i1 to i32
    %c0_i32_4 = arith.constant 0 : i32
    %8 = arith.cmpi ne, %7, %c0_i32_4 : i32
    scf.if %8 {
      %c0_6 = arith.constant 0 : index
      %c0_7 = arith.constant 0 : index
      %12 = vector.load %arg5[%c0_6, %c0_7] : memref<2x32xf32, #tpu.memory_space<vmem>>, vector<1x32xf32>
      %cst = arith.constant dense<0.000000e+00> : vector<32xf32>
      %13 = vector.multi_reduction <add>, %5, %cst [0] : vector<8x32xf32> to vector<32xf32>
      %14 = vector.shape_cast %13 : vector<32xf32> to vector<1x32xf32>
      %15 = arith.addf %12, %14 : vector<1x32xf32>
      %c0_8 = arith.constant 0 : index
      %c0_9 = arith.constant 0 : index
      %16 = vector.load %arg5[%c0_8, %c0_9] : memref<2x32xf32, #tpu.memory_space<vmem>>, vector<1x32xf32>
      tpu.vector_store %arg5[%c0_8, %c0_9], %15 {strides = array<i32>} : memref<2x32xf32, #tpu.memory_space<vmem>>, vector<1x32xf32>,
      %c1 = arith.constant 1 : index
      %c0_10 = arith.constant 0 : index
      %17 = vector.load %arg5[%c1, %c0_10] : memref<2x32xf32, #tpu.memory_space<vmem>>, vector<1x32xf32>
      %18 = arith.mulf %5, %5 : vector<8x32xf32>
      %cst_11 = arith.constant dense<0.000000e+00> : vector<32xf32>
      %19 = vector.multi_reduction <add>, %18, %cst_11 [0] : vector<8x32xf32> to vector<32xf32>
      %20 = vector.shape_cast %19 : vector<32xf32> to vector<1x32xf32>
      %21 = arith.addf %17, %20 : vector<1x32xf32>
      %c1_12 = arith.constant 1 : index
      %c0_13 = arith.constant 0 : index
      %22 = vector.load %arg5[%c1_12, %c0_13] : memref<2x32xf32, #tpu.memory_space<vmem>>, vector<1x32xf32>
      tpu.vector_store %arg5[%c1_12, %c0_13], %21 {strides = array<i32>} : memref<2x32xf32, #tpu.memory_space<vmem>>, vector<1x32xf32>,
    } else {
    }
    %c1_i32 = arith.constant 1 : i32
    %9 = arith.cmpi eq, %arg0, %c1_i32 : i32
    %10 = arith.extui %9 : i1 to i32
    %c0_i32_5 = arith.constant 0 : i32
    %11 = arith.cmpi ne, %10, %c0_i32_5 : i32
    scf.if %11 {
      %c0_6 = arith.constant 0 : index
      %c0_7 = arith.constant 0 : index
      %12 = vector.load %arg5[%c0_6, %c0_7] : memref<2x32xf32, #tpu.memory_space<vmem>>, vector<1x32xf32>
      %cst = arith.constant 1.250000e-01 : f32
      %13 = vector.broadcast %cst : f32 to vector<1x32xf32>
      %14 = arith.mulf %12, %13 : vector<1x32xf32>
      %c1 = arith.constant 1 : index
      %c0_8 = arith.constant 0 : index
      %15 = vector.load %arg5[%c1, %c0_8] : memref<2x32xf32, #tpu.memory_space<vmem>>, vector<1x32xf32>
      %cst_9 = arith.constant 1.250000e-01 : f32
      %16 = vector.broadcast %cst_9 : f32 to vector<1x32xf32>
      %17 = arith.mulf %15, %16 : vector<1x32xf32>
      %18 = arith.mulf %14, %14 : vector<1x32xf32>
      %19 = arith.subf %17, %18 : vector<1x32xf32>
      %cst_10 = arith.constant 0.000000e+00 : f32
      %20 = vector.broadcast %cst_10 : f32 to vector<1x32xf32>
      %21 = arith.maximumf %19, %20 : vector<1x32xf32>
      %cst_11 = arith.constant 9.99999974E-6 : f32
      %22 = vector.broadcast %cst_11 : f32 to vector<1x32xf32>
      %23 = arith.addf %21, %22 : vector<1x32xf32>
      %24 = math.rsqrt %23 : vector<1x32xf32>
      %25 = vector.broadcast %14 : vector<1x32xf32> to vector<8x32xf32>
      %26 = arith.subf %5, %25 : vector<8x32xf32>
      %27 = vector.broadcast %24 : vector<1x32xf32> to vector<8x32xf32>
      %28 = arith.mulf %26, %27 : vector<8x32xf32>
      %c0_12 = arith.constant 0 : index
      %c0_13 = arith.constant 0 : index
      %29 = vector.load %arg3[%c0_12, %c0_13] : memref<32x128xf32, #tpu.memory_space<vmem>>, vector<32x128xf32>
      %cst_14 = arith.constant dense<0.000000e+00> : vector<8x128xf32>
      %30 = tpu.matmul %28, %29, %cst_14 {dimension_numbers = #tpu.dot_dimension_numbers<[1], [0], [0], [1], [0, 0, 1, 1], [], []>} : vector<8x32xf32>, vector<32x128xf32>, vector<8x128xf32> -> vector<8x128xf32>
      %c0_15 = arith.constant 0 : index
      %c0_16 = arith.constant 0 : index
      %31 = vector.load %arg4[%c0_15, %c0_16] : memref<1x128xf32, #tpu.memory_space<vmem>>, vector<1x128xf32>
      %32 = vector.broadcast %31 : vector<1x128xf32> to vector<8x128xf32>
      %33 = arith.addf %30, %32 : vector<8x128xf32>
      %34 = math.tanh %33 : vector<8x128xf32>
      %c0_17 = arith.constant 0 : index
      %c0_18 = arith.constant 0 : index
      %35 = vector.load %arg6[%c0_17, %c0_18] : memref<2x128xf32, #tpu.memory_space<vmem>>, vector<1x128xf32>
      %cst_19 = arith.constant dense<0.000000e+00> : vector<128xf32>
      %36 = vector.multi_reduction <add>, %34, %cst_19 [0] : vector<8x128xf32> to vector<128xf32>
      %37 = vector.shape_cast %36 : vector<128xf32> to vector<1x128xf32>
      %38 = arith.addf %35, %37 : vector<1x128xf32>
      %c0_20 = arith.constant 0 : index
      %c0_21 = arith.constant 0 : index
      %39 = vector.load %arg6[%c0_20, %c0_21] : memref<2x128xf32, #tpu.memory_space<vmem>>, vector<1x128xf32>
      tpu.vector_store %arg6[%c0_20, %c0_21], %38 {strides = array<i32>} : memref<2x128xf32, #tpu.memory_space<vmem>>, vector<1x128xf32>,
      %c1_22 = arith.constant 1 : index
      %c0_23 = arith.constant 0 : index
      %40 = vector.load %arg6[%c1_22, %c0_23] : memref<2x128xf32, #tpu.memory_space<vmem>>, vector<1x128xf32>
      %41 = arith.mulf %34, %34 : vector<8x128xf32>
      %cst_24 = arith.constant dense<0.000000e+00> : vector<128xf32>
      %42 = vector.multi_reduction <add>, %41, %cst_24 [0] : vector<8x128xf32> to vector<128xf32>
      %43 = vector.shape_cast %42 : vector<128xf32> to vector<1x128xf32>
      %44 = arith.addf %40, %43 : vector<1x128xf32>
      %c1_25 = arith.constant 1 : index
      %c0_26 = arith.constant 0 : index
      %45 = vector.load %arg6[%c1_25, %c0_26] : memref<2x128xf32, #tpu.memory_space<vmem>>, vector<1x128xf32>
      tpu.vector_store %arg6[%c1_25, %c0_26], %44 {strides = array<i32>} : memref<2x128xf32, #tpu.memory_space<vmem>>, vector<1x128xf32>,
    } else {
    }
    return
  }
  func.func @transform_0(%arg0: i32, %arg1: i32) -> (i32, i32) {
    %c0_i32 = arith.constant 0 : i32
    %c0_i32_0 = arith.constant 0 : i32
    return %arg1, %c0_i32 : i32, i32
  }
  func.func @transform_1(%arg0: i32, %arg1: i32) -> (i32, i32) {
    %c0_i32 = arith.constant 0 : i32
    %c0_i32_0 = arith.constant 0 : i32
    %c0_i32_1 = arith.constant 0 : i32
    return %c0_i32, %c0_i32_0 : i32, i32
  }
  func.func @transform_2(%arg0: i32, %arg1: i32) -> (i32, i32) {
    %c0_i32 = arith.constant 0 : i32
    %c0_i32_0 = arith.constant 0 : i32
    %c0_i32_1 = arith.constant 0 : i32
    return %c0_i32, %c0_i32_0 : i32, i32
  }
  func.func @transform_3(%arg0: i32, %arg1: i32) -> (i32, i32) {
    %c0_i32 = arith.constant 0 : i32
    %c0_i32_0 = arith.constant 0 : i32
    %c0_i32_1 = arith.constant 0 : i32
    return %c0_i32, %c0_i32_0 : i32, i32
  }
  func.func @transform_4(%arg0: i32, %arg1: i32) -> (i32, i32) {
    %c0_i32 = arith.constant 0 : i32
    %c0_i32_0 = arith.constant 0 : i32
    %c0_i32_1 = arith.constant 0 : i32
    return %c0_i32, %c0_i32_0 : i32, i32
  }
}

module attributes {stable_mosaic.version = 11 : i64} {
  func.func @apply_kernel(%arg0: i32, %arg1: memref<8x32xf32, #tpu.memory_space<vmem>>, %arg2: memref<32x128xf32, #tpu.memory_space<vmem>>, %arg3: memref<1x128xf32, #tpu.memory_space<vmem>>, %arg4: memref<128x16xf32, #tpu.memory_space<vmem>>, %arg5: memref<1x16xf32, #tpu.memory_space<vmem>>, %arg6: memref<8x16xf32, #tpu.memory_space<vmem>>) attributes {dimension_semantics = [#tpu.dimension_semantics<parallel>], iteration_bounds = array<i64: 1>, scalar_prefetch = 0 : i64, scratch_operands = 0 : i64, tpu.core_type = #tpu.core_type<tc>, window_params = [{transform_indices = @transform_0, window_bounds = array<i64: 8, 32>}, {pipeline_mode = #tpu.pipeline_mode<synchronous>, transform_indices = @transform_1, window_bounds = array<i64: 32, 128>}, {pipeline_mode = #tpu.pipeline_mode<synchronous>, transform_indices = @transform_2, window_bounds = array<i64: 1, 128>}, {pipeline_mode = #tpu.pipeline_mode<synchronous>, transform_indices = @transform_3, window_bounds = array<i64: 128, 16>}, {pipeline_mode = #tpu.pipeline_mode<synchronous>, transform_indices = @transform_4, window_bounds = array<i64: 1, 16>}, {transform_indices = @transform_5, window_bounds = array<i64: 8, 16>}]} {
    %c0 = arith.constant 0 : index
    %c0_0 = arith.constant 0 : index
    %0 = vector.load %arg1[%c0, %c0_0] : memref<8x32xf32, #tpu.memory_space<vmem>>, vector<8x32xf32>
    %c0_1 = arith.constant 0 : index
    %c0_2 = arith.constant 0 : index
    %1 = vector.load %arg2[%c0_1, %c0_2] : memref<32x128xf32, #tpu.memory_space<vmem>>, vector<32x128xf32>
    %cst = arith.constant dense<0.000000e+00> : vector<8x128xf32>
    %2 = tpu.matmul %0, %1, %cst {dimension_numbers = #tpu.dot_dimension_numbers<[1], [0], [0], [1], [0, 0, 1, 1], [], []>} : vector<8x32xf32>, vector<32x128xf32>, vector<8x128xf32> -> vector<8x128xf32>
    %c0_3 = arith.constant 0 : index
    %c0_4 = arith.constant 0 : index
    %3 = vector.load %arg3[%c0_3, %c0_4] : memref<1x128xf32, #tpu.memory_space<vmem>>, vector<1x128xf32>
    %4 = vector.broadcast %3 : vector<1x128xf32> to vector<8x128xf32>
    %5 = arith.addf %2, %4 : vector<8x128xf32>
    %6 = math.tanh %5 : vector<8x128xf32>
    %c0_5 = arith.constant 0 : index
    %c0_6 = arith.constant 0 : index
    %7 = vector.load %arg4[%c0_5, %c0_6] : memref<128x16xf32, #tpu.memory_space<vmem>>, vector<128x16xf32>
    %cst_7 = arith.constant dense<0.000000e+00> : vector<8x16xf32>
    %8 = tpu.matmul %6, %7, %cst_7 {dimension_numbers = #tpu.dot_dimension_numbers<[1], [0], [0], [1], [0, 0, 1, 1], [], []>} : vector<8x128xf32>, vector<128x16xf32>, vector<8x16xf32> -> vector<8x16xf32>
    %c0_8 = arith.constant 0 : index
    %c0_9 = arith.constant 0 : index
    %9 = vector.load %arg5[%c0_8, %c0_9] : memref<1x16xf32, #tpu.memory_space<vmem>>, vector<1x16xf32>
    %10 = vector.broadcast %9 : vector<1x16xf32> to vector<8x16xf32>
    %11 = arith.addf %8, %10 : vector<8x16xf32>
    %c0_10 = arith.constant 0 : index
    %c0_11 = arith.constant 0 : index
    %12 = vector.load %arg6[%c0_10, %c0_11] : memref<8x16xf32, #tpu.memory_space<vmem>>, vector<8x16xf32>
    tpu.vector_store %arg6[%c0_10, %c0_11], %11 {strides = array<i32>} : memref<8x16xf32, #tpu.memory_space<vmem>>, vector<8x16xf32>,
    return
  }
  func.func @transform_0(%arg0: i32) -> (i32, i32) {
    %c0_i32 = arith.constant 0 : i32
    %c0_i32_0 = arith.constant 0 : i32
    return %arg0, %c0_i32 : i32, i32
  }
  func.func @transform_1(%arg0: i32) -> (i32, i32) {
    %c0_i32 = arith.constant 0 : i32
    %c0_i32_0 = arith.constant 0 : i32
    %c0_i32_1 = arith.constant 0 : i32
    return %c0_i32, %c0_i32_0 : i32, i32
  }
  func.func @transform_2(%arg0: i32) -> (i32, i32) {
    %c0_i32 = arith.constant 0 : i32
    %c0_i32_0 = arith.constant 0 : i32
    %c0_i32_1 = arith.constant 0 : i32
    return %c0_i32, %c0_i32_0 : i32, i32
  }
  func.func @transform_3(%arg0: i32) -> (i32, i32) {
    %c0_i32 = arith.constant 0 : i32
    %c0_i32_0 = arith.constant 0 : i32
    %c0_i32_1 = arith.constant 0 : i32
    return %c0_i32, %c0_i32_0 : i32, i32
  }
  func.func @transform_4(%arg0: i32) -> (i32, i32) {
    %c0_i32 = arith.constant 0 : i32
    %c0_i32_0 = arith.constant 0 : i32
    %c0_i32_1 = arith.constant 0 : i32
    return %c0_i32, %c0_i32_0 : i32, i32
  }
  func.func @transform_5(%arg0: i32) -> (i32, i32) {
    %c0_i32 = arith.constant 0 : i32
    %c0_i32_0 = arith.constant 0 : i32
    return %arg0, %c0_i32 : i32, i32
  }
}

</mosaic_0001>

<llo_original>
// kernel: decoder_forward.2
$region0: #{decoder_forward.2}
  #allocation0 [shape = 'u32[]', space=smem, size = 0x4, offset = 0x4, fixed_abs, tag = 'smem constant byte address 0x4 - core index']
  #allocation1 [shape = 'u32[144,128]{1,0:T(1,128)}', space=vmem, size = 0x12000, scoped, tag = 'internal scratch']
  %s0 = inlined_call_operand.vmem [shape: f32[8,32], index: 0, kind: input, shape index: {}]
  %s1 = inlined_call_operand.vmem [shape: f32[32,128], index: 1, kind: input, shape index: {}]
  %s2 = inlined_call_operand.vmem [shape: f32[1,128], index: 2, kind: input, shape index: {}]
  %s3 = inlined_call_operand.vmem [shape: f32[2,32], index: 3, kind: output, shape index: {0}]
  %s4 = inlined_call_operand.vmem [shape: f32[2,128], index: 4, kind: output, shape index: {1}]
  %5 = xla_tuple %s3, %s4
  %s6 = sld [smem:[#allocation0]]
  $region65: #{decoder_forward.2} parent=0
    _
  %s8 = ssub.s32 1, %s6
  %s9 = scalar_select 0, %s8, %s6
  loop: start=0, step=1, limit=4
  $region2: #{decoder_forward.2} parent=0 // loop_pre_header
    _
  $region3: #{decoder_forward.2} parent=0 // loop_header
    %s11 = sphi 0, %s15
    %p12 = scmp.ge.s32.totalorder %s11, 4
    %s18 = sphi 0, %s30
    %s19 = sphi 0, %s26
    %s20 = sphi 0, %s18
    %s21 = sphi 0, %s19
    %s22 = sphi 0, %s20
    %s23 = sphi 0, %s21
    %s33 = sphi 0, %s35
    %s36 = sphi 0, %s33
    %s37 = sphi 0, %s36
    %s53 = sphi 0, %s37
    %s57 = sphi 0, %s57
    %s59 = sphi 0, %s57
    %s60 = sphi 0, %s59
    %s74 = sphi 0, %s60
    %s78 = sphi 0, %s78
    %s80 = sphi 0, %s78
    %s81 = sphi 0, %s80
    %s95 = sphi 0, %s81
    %s99 = sphi 0, %s99
    %s101 = sphi 0, %s99
    %s102 = sphi 0, %s101
    %s116 = sphi 0, %s102
    %s120 = sphi 0, %s120
    %s122 = sphi 0, %s120
    %s123 = sphi 0, %s122
    %s137 = sphi 0, %s123
  $region4: #{decoder_forward.2} parent=0 // loop_header_branch
    %14 = sbr.rel (%p12) target = $region8
  $region5: #{decoder_forward.2} parent=0 // loop_body
    %s16 = ssub.s32 %s11, 1
    %s17 = ssub.s32 %s11, 2
    %s24 = sadd.s32 1, %s19
    %p25 = scmp.ge.s32.totalorder %s24, 1
    %s26 = scalar_select %p25, 0, %s24
    %s27 = sadd.s32 1, %s18
    %s28 = scalar_select %p25, %s27, %s18
    %p29 = scmp.ge.s32.totalorder %s28, 2
    %s30 = scalar_select %p29, 0, %s28
    %s31 = ssub.s32 %s19, %s26
    %p32 = scmp.eq.s32.totalorder %s31, 0
    %s34 = sadd.s32 %s33, 1
    %s35 = scalar_select %p32, %s33, %s34
    %p38 = pneg %p32
    %p39 = scmp.eq.s32.totalorder %s11, 1
    %p40 = por %p38, %p39
    %p41 = scmp.ne.s32.totalorder %s33, %s36
    %p42 = scmp.eq.s32.totalorder %s11, 0
    %p43 = por %p41, %p42
    %p44 = scmp.ne.s32.totalorder %s33, %s36
    %p45 = scmp.eq.s32.totalorder %s16, 1
    %p46 = por %p44, %p45
    %p47 = scmp.ne.s32.totalorder %s36, %s37
    %p48 = scmp.eq.s32.totalorder %s16, 0
    %p49 = por %p47, %p48
    %p50 = scmp.ne.s32.totalorder %s36, %s37
    %p51 = scmp.eq.s32.totalorder %s17, 1
    %p52 = por %p50, %p51
    %p54 = scmp.ne.s32.totalorder %s37, %s53
    %p55 = scmp.eq.s32.totalorder %s17, 0
    %p56 = por %p54, %p55
    %s58 = sadd.s32 %s57, 1
    %p61 = scmp.eq.s32.totalorder %s11, 1
    %p62 = scmp.ne.s32.totalorder %s57, %s59
    %p63 = scmp.eq.s32.totalorder %s11, 0
    %p64 = por %p62, %p63
    %p65 = scmp.ne.s32.totalorder %s57, %s59
    %p66 = scmp.eq.s32.totalorder %s16, 1
    %p67 = por %p65, %p66
    %p68 = scmp.ne.s32.totalorder %s59, %s60
    %p69 = scmp.eq.s32.totalorder %s16, 0
    %p70 = por %p68, %p69
    %p71 = scmp.ne.s32.totalorder %s59, %s60
    %p72 = scmp.eq.s32.totalorder %s17, 1
    %p73 = por %p71, %p72
    %p75 = scmp.ne.s32.totalorder %s60, %s74
    %p76 = scmp.eq.s32.totalorder %s17, 0
    %p77 = por %p75, %p76
    %s79 = sadd.s32 %s78, 1
    %p82 = scmp.eq.s32.totalorder %s11, 1
    %p83 = scmp.ne.s32.totalorder %s78, %s80
    %p84 = scmp.eq.s32.totalorder %s11, 0
    %p85 = por %p83, %p84
    %p86 = scmp.ne.s32.totalorder %s78, %s80
    %p87 = scmp.eq.s32.totalorder %s16, 1
    %p88 = por %p86, %p87
    %p89 = scmp.ne.s32.totalorder %s80, %s81
    %p90 = scmp.eq.s32.totalorder %s16, 0
    %p91 = por %p89, %p90
    %p92 = scmp.ne.s32.totalorder %s80, %s81
    %p93 = scmp.eq.s32.totalorder %s17, 1
    %p94 = por %p92, %p93
    %p96 = scmp.ne.s32.totalorder %s81, %s95
    %p97 = scmp.eq.s32.totalorder %s17, 0
    %p98 = por %p96, %p97
    %s100 = sadd.s32 %s99, 1
    %p103 = scmp.eq.s32.totalorder %s11, 1
    %p104 = scmp.ne.s32.totalorder %s99, %s101
    %p105 = scmp.eq.s32.totalorder %s11, 0
    %p106 = por %p104, %p105
    %p107 = scmp.ne.s32.totalorder %s99, %s101
    %p108 = scmp.eq.s32.totalorder %s16, 1
    %p109 = por %p107, %p108
    %p110 = scmp.ne.s32.totalorder %s101, %s102
    %p111 = scmp.eq.s32.totalorder %s16, 0
    %p112 = por %p110, %p111
    %p113 = scmp.ne.s32.totalorder %s101, %s102
    %p114 = scmp.eq.s32.totalorder %s17, 1
    %p115 = por %p113, %p114
    %p117 = scmp.ne.s32.totalorder %s102, %s116
    %p118 = scmp.eq.s32.totalorder %s17, 0
    %p119 = por %p117, %p118
    %s121 = sadd.s32 %s120, 1
    %p124 = scmp.eq.s32.totalorder %s11, 1
    %p125 = scmp.ne.s32.totalorder %s120, %s122
    %p126 = scmp.eq.s32.totalorder %s11, 0
    %p127 = por %p125, %p126
    %p128 = scmp.ne.s32.totalorder %s120, %s122
    %p129 = scmp.eq.s32.totalorder %s16, 1
    %p130 = por %p128, %p129
    %p131 = scmp.ne.s32.totalorder %s122, %s123
    %p132 = scmp.eq.s32.totalorder %s16, 0
    %p133 = por %p131, %p132
    %p134 = scmp.ne.s32.totalorder %s122, %s123
    %p135 = scmp.eq.s32.totalorder %s17, 1
    %p136 = por %p134, %p135
    %p138 = scmp.ne.s32.totalorder %s123, %s137
    %p139 = scmp.eq.s32.totalorder %s17, 0
    %p140 = por %p138, %p139
    %p141 = scmp.le.s32.totalorder 1, %s11
    %p142 = scmp.lt.s32.totalorder %s11, 3
    %p143 = pnand %p141, %p142
    %p144 = pneg %p143
    // Predicated region
    $region9: #{decoder_forward.2} parent=5 // pred_check
      _
    $region10: #{decoder_forward.2} parent=5 // pred_check_branch
      %146 = sbr.rel (%p143) target = $region12
    $region11: #{decoder_forward.2} parent=5 // pred_region
      %s147 = ssub.s32 %s11, 1
      // Predicated region
      $region13: #{decoder_forward.2} parent=11 // pred_check
        %p148 = pneg %p49
      $region14: #{decoder_forward.2} parent=11 // pred_check_branch
        %150 = sbr.rel (%p148) target = $region16
      $region15: #{decoder_forward.2} parent=11 // pred_region
        %p151 = scmp.lt.s32.totalorder %s21, 0
        %s152 = scalar_select %p151, %s21, 0
        %s153 = smul.addr %s152, 8
        %s154 = scalar_lea.vmem %s0, %s153
      $region16: #{decoder_forward.2} parent=11 // pred_fallthru
        _
      // Predicated region
      $region17: #{decoder_forward.2} parent=11 // pred_check
        %p155 = pneg %p70
      $region18: #{decoder_forward.2} parent=11 // pred_check_branch
        %157 = sbr.rel (%p155) target = $region20
      $region19: #{decoder_forward.2} parent=11 // pred_region
        _
      $region20: #{decoder_forward.2} parent=11 // pred_fallthru
        _
      // Predicated region
      $region21: #{decoder_forward.2} parent=11 // pred_check
        %p158 = pneg %p91
      $region22: #{decoder_forward.2} parent=11 // pred_check_branch
        %160 = sbr.rel (%p158) target = $region24
      $region23: #{decoder_forward.2} parent=11 // pred_region
        _
      $region24: #{decoder_forward.2} parent=11 // pred_fallthru
        _
    $region12: #{decoder_forward.2} parent=5 // pred_fallthru
      _
    %p161 = scmp.lt.s32.totalorder %s11, 2
    // Predicated region
    $region25: #{decoder_forward.2} parent=5 // pred_check
      %p162 = pneg %p161
    $region26: #{decoder_forward.2} parent=5 // pred_check_branch
      %164 = sbr.rel (%p162) target = $region28
    $region27: #{decoder_forward.2} parent=5 // pred_region
      _
    $region28: #{decoder_forward.2} parent=5 // pred_fallthru
      _
    %p165 = scmp.le.s32.totalorder 1, %s11
    %p166 = scmp.lt.s32.totalorder %s11, 3
    %p167 = pnand %p165, %p166
    %p168 = pneg %p167
    // Predicated region
    $region29: #{decoder_forward.2} parent=5 // pred_check
      _
    $region30: #{decoder_forward.2} parent=5 // pred_check_branch
      %170 = sbr.rel (%p167) target = $region32
    $region31: #{decoder_forward.2} parent=5 // pred_region
      %s171 = ssub.s32 %s11, 1
      %p172 = scmp.lt.s32.totalorder %s21, 0
      %s173 = scalar_select %p172, %s21, 0
      %s174 = smul.addr %s173, 8
      %s175 = scalar_lea.vmem %s0, %s174
      %p176 = pneg %p49
      %p177 = pneg %p46
      %p178 = pneg %p70
      %p179 = pneg %p67
      %p180 = pneg %p91
      %p181 = pneg %p88
      %p182 = pneg %p112
      %p183 = pneg %p109
      %p184 = pneg %p133
      %p185 = pneg %p130
      %p186 = scmp.lt.s32.totalorder %s21, 0
      %s187 = scalar_select %p186, %s21, 0
      %s188 = smul.addr %s187, 8
      %s189 = scalar_lea.vmem %s0, %s188
      %p190 = scmp.eq.s32.totalorder %s20, 0
      %p191 = scmp.eq.s32.totalorder %s21, 0
      %p192 = pnand %p190, %p191
      %p193 = pneg %p192
      // Predicated region
      $region33: #{decoder_forward.2} parent=31 // pred_check
        _
      $region34: #{decoder_forward.2} parent=31 // pred_check_branch
        %195 = sbr.rel (%p192) target = $region36
      $region35: #{decoder_forward.2} parent=31 // pred_region
        %vm196 = vcmask 254976
        %197 = vst.msk [vmem:[%s3] sm:$0x3] %vm196, 0.0
        %198 = vst [vmem:[%s4] sm:$0x3] 0.0
      $region36: #{decoder_forward.2} parent=31 // pred_fallthru
        _
      %v199 = vld [vmem:[%s189] sm:$0xff]
      // Predicated region
      $region37: #{decoder_forward.2} parent=31 // pred_check
        %p200 = pneg %p190
      $region38: #{decoder_forward.2} parent=31 // pred_check_branch
        %202 = sbr.rel (%p200) target = $region40
      $region39: #{decoder_forward.2} parent=31 // pred_region
        %v203 = vld [vmem:[%s3] sm:$0x1]
        %vm204 = vcmask 261120
        %v205 = vsel %vm204, %v199, 0.0
        %v206 = vrot.slane %v205, 4
        %v207 = vadd.f32 %v205, %v206
        %v208 = vrot.slane %v207, 2
        %v209 = vadd.f32 %v207, %v208
        %v210 = vrot.slane %v209, 1
        %v211 = vadd.f32 %v209, %v210
        %v212 = vadd.f32 %v203, %v211
        %vm213 = vcmask 253952
        %214 = vst.msk [vmem:[%s3] sm:$0x1] %vm213, %v212
        %v215 = vld [vmem:[%s3 + $0x1] sm:$0x1]
        %v216 = vmul.f32 %v199, %v199
        %v217 = vsel %vm204, %v216, 0.0
        %v218 = vrot.slane %v217, 4
        %v219 = vadd.f32 %v217, %v218
        %v220 = vrot.slane %v219, 2
        %v221 = vadd.f32 %v219, %v220
        %v222 = vrot.slane %v221, 1
        %v223 = vadd.f32 %v221, %v222
        %v224 = vadd.f32 %v215, %v223
        %225 = vst.msk [vmem:[%s3 + $0x1] sm:$0x1] %vm213, %v224
      $region40: #{decoder_forward.2} parent=31 // pred_fallthru
        _
      %p226 = scmp.eq.s32.totalorder %s20, 1
      // Predicated region
      $region41: #{decoder_forward.2} parent=31 // pred_check
        %p227 = pneg %p226
      $region42: #{decoder_forward.2} parent=31 // pred_check_branch
        %229 = sbr.rel (%p227) target = $region44
      $region43: #{decoder_forward.2} parent=31 // pred_region
        %v230 = vld [vmem:[%s3] sm:$0x1]
        %v231 = vmul.f32 %v230, 0.125
        %v232 = vld [vmem:[%s3 + $0x1] sm:$0x1]
        %v233 = vmul.f32 %v232, 0.125
        %v234 = vmul.f32 %v231, %v231
        %v235 = vsub.f32 %v233, %v234
        %v236 = vmax.f32 %v235, 0.0
        %v237 = vadd.f32 %v236, 1e-05
        %v238 = vrsqrt.pop %v237
        %v239 = vlaneseq
        %v240 = vshrl.u32 %v239, 7
        %v241 = vsub.s32 0, %v240
        %v242 = vrot.slane %v231, %v241
        %v243 = vsub.f32 %v199, %v242
        %v244 = vlaneseq
        %v245 = vshrl.u32 %v244, 7
        %v246 = vsub.s32 0, %v245
        %v247 = vrot.slane %v238, %v246
        %v248 = vmul.f32 %v243, %v247
        %v249 = vld [vmem:[%s1] sm:$0xff]
        %v250 = vld [vmem:[%s1 + $0x8] sm:$0xff]
        %v251 = vld [vmem:[%s1 + $0x10] sm:$0xff]
        %v252 = vld [vmem:[%s1 + $0x18] sm:$0xff]
        %v253 = vld [vmem:[%s2] sm:$0x1]
        %v255 = vlaneseq
        %v256 = vshrl.u32 %v255, 7
        %v257 = vsub.s32 0, %v256
        %v258 = vrot.slane %v253, %v257
        %vm260 = vcmask 261120
        %v262 = vsel %vm260, %v248, 0
        %264 = vmatprep.subr.mxu0 0.0
        %265 = vmatpush1.msra.mxu0 %v249
        %266 = vmatprep.subr.mxu0 0.0
        %267 = vmatpush1.msra.mxu0 %v250
        %268 = vmatprep.subr.mxu0 0.0
        %269 = vmatpush1.msra.mxu0 %v251
        %270 = vmatprep.subr.mxu0 0.0
        %271 = vmatpush1.msra.mxu0 %v252
        %272 = vmatprep.subr.mxu0 0.0
        %273 = vmatpush1.msra.mxu0 0.0
        %274 = vmatprep.subr.mxu0 0.0
        %275 = vmatpush1.msra.mxu0 0.0
        %276 = vmatprep.subr.mxu0 0.0
        %277 = vmatpush1.msra.mxu0 0.0
        %278 = vmatprep.subr.mxu0 0.0
        %279 = vmatpush1.msra.mxu0 0.0
        %280 = vmatprep.subr.mxu0 0.0
        %281 = vmatpush1.msra.mxu0 0.0
        %282 = vmatprep.subr.mxu0 0.0
        %283 = vmatpush1.msra.mxu0 0.0
        %284 = vmatprep.subr.mxu0 0.0
        %285 = vmatpush1.msra.mxu0 0.0
        %286 = vmatprep.subr.mxu0 0.0
        %287 = vmatpush1.msra.mxu0 0.0
        %288 = vmatprep.subr.mxu0 0.0
        %289 = vmatpush1.msra.mxu0 0.0
        %290 = vmatprep.subr.mxu0 0.0
        %291 = vmatpush1.msra.mxu0 0.0
        %292 = vmatprep.subr.mxu0 0.0
        %293 = vmatpush1.msra.mxu0 0.0
        %294 = vmatprep.subr.mxu0 0.0
        %295 = vmatpush1.msra.mxu0 0.0
        %296 = vmatprep.subr.mxu0 0.0
        %297 = vmatpush1.msra.mxu0 0.0
        %298 = vmatprep.subr.mxu0 0.0
        %299 = vmatpush1.msra.mxu0 0.0
        %300 = vmatprep.subr.mxu0 0.0
        %301 = vmatpush1.msra.mxu0 0.0
        %302 = vmatprep.subr.mxu0 0.0
        %303 = vmatpush1.msra.mxu0 0.0
        %304 = vmatprep.subr.mxu0 0.0
        %305 = vmatpush1.msra.mxu0 0.0
        %306 = vmatprep.subr.mxu0 0.0
        %307 = vmatpush1.msra.mxu0 0.0
        %308 = vmatprep.subr.mxu0 0.0
        %309 = vmatpush1.msra.mxu0 0.0
        %310 = vmatprep.subr.mxu0 0.0
        %311 = vmatpush1.msra.mxu0 0.0
        %312 = vmatprep.subr.mxu0 0.0
        %313 = vmatpush1.msra.mxu0 0.0
        %314 = vmatprep.subr.mxu0 0.0
        %315 = vmatpush1.msra.mxu0 0.0
        %316 = vmatprep.subr.mxu0 0.0
        %317 = vmatpush1.msra.mxu0 0.0
        %318 = vmatprep.subr.mxu0 0.0
        %319 = vmatpush1.msra.mxu0 0.0
        %320 = vmatprep.subr.mxu0 0.0
        %321 = vmatpush1.msra.mxu0 0.0
        %322 = vmatprep.subr.mxu0 0.0
        %323 = vmatpush1.msra.mxu0 0.0
        %324 = vmatprep.subr.mxu0 0.0
        %325 = vmatpush1.msra.mxu0 0.0
        %326 = vmatprep.subr.mxu0 0.0
        %327 = vmatpush1.msra.mxu0 0.0
        %328 = vmatprep.mubr.f32.mxu0 0.0
        %329 = vmatmul.mubr.f32.gmra.mrb[0].mxu0 %v262
        %v330 = vpop.f32.mrb[0].mxu0
        %v331 = vadd.f32 %v258, %v330
        %v332 = vpop.f32.mrb[0].mxu0
        %333 = vdwg.mxu0
        %v334 = vtanh.pop %v331
        %v335 = vld [vmem:[%s4] sm:$0x1]
        %v336 = vrot.slane %v334, 4
        %v337 = vadd.f32 %v334, %v336
        %v338 = vrot.slane %v337, 2
        %v339 = vadd.f32 %v337, %v338
        %v340 = vrot.slane %v339, 1
        %v341 = vadd.f32 %v339, %v340
        %v342 = vadd.f32 %v335, %v341
        %343 = vst [vmem:[%s4] sm:$0x1] %v342
        %v344 = vld [vmem:[%s4 + $0x1] sm:$0x1]
        %v345 = vmul.f32 %v334, %v334
        %v346 = vrot.slane %v345, 4
        %v347 = vadd.f32 %v345, %v346
        %v348 = vrot.slane %v347, 2
        %v349 = vadd.f32 %v347, %v348
        %v350 = vrot.slane %v349, 1
        %v351 = vadd.f32 %v349, %v350
        %v352 = vadd.f32 %v344, %v351
        %353 = vst [vmem:[%s4 + $0x1] sm:$0x1] %v352
      $region44: #{decoder_forward.2} parent=31 // pred_fallthru
        _
      // Predicated region
      $region45: #{decoder_forward.2} parent=31 // pred_check
        %p354 = pneg %p109
      $region46: #{decoder_forward.2} parent=31 // pred_check_branch
        %356 = sbr.rel (%p354) target = $region48
      $region47: #{decoder_forward.2} parent=31 // pred_region
        _
      $region48: #{decoder_forward.2} parent=31 // pred_fallthru
        _
      // Predicated region
      $region49: #{decoder_forward.2} parent=31 // pred_check
        %p357 = pneg %p130
      $region50: #{decoder_forward.2} parent=31 // pred_check_branch
        %359 = sbr.rel (%p357) target = $region52
      $region51: #{decoder_forward.2} parent=31 // pred_region
        _
      $region52: #{decoder_forward.2} parent=31 // pred_fallthru
        _
      // Predicated region
      $region53: #{decoder_forward.2} parent=31 // pred_check
        %p360 = pneg %p109
      $region54: #{decoder_forward.2} parent=31 // pred_check_branch
        %362 = sbr.rel (%p360) target = $region56
      $region55: #{decoder_forward.2} parent=31 // pred_region
        _
      $region56: #{decoder_forward.2} parent=31 // pred_fallthru
        _
      // Predicated region
      $region57: #{decoder_forward.2} parent=31 // pred_check
        %p363 = pneg %p130
      $region58: #{decoder_forward.2} parent=31 // pred_check_branch
        %365 = sbr.rel (%p363) target = $region60
      $region59: #{decoder_forward.2} parent=31 // pred_region
        _
      $region60: #{decoder_forward.2} parent=31 // pred_fallthru
        _
    $region32: #{decoder_forward.2} parent=5 // pred_fallthru
      _
    %p366 = scmp.le.s32.totalorder 2, %s11
    // Predicated region
    $region61: #{decoder_forward.2} parent=5 // pred_check
      %p367 = pneg %p366
    $region62: #{decoder_forward.2} parent=5 // pred_check_branch
      %369 = sbr.rel (%p367) target = $region64
    $region63: #{decoder_forward.2} parent=5 // pred_region
      %s370 = ssub.s32 %s11, 2
    $region64: #{decoder_forward.2} parent=5 // pred_fallthru
      _
  $region6: #{decoder_forward.2} parent=0 // loop_footer
    %s15 = sadd.s32 1, %s11
  $region7: #{decoder_forward.2} parent=0 // loop_footer_branch
    %10 = sbr.rel target = $region3
  $region8: #{decoder_forward.2} parent=0 // loop_exit
    _

// kernel: decoder_forward.3
$region0: #{decoder_forward.3}
  #allocation0 [shape = 'u32[]', space=smem, size = 0x4, offset = 0x4, fixed_abs, tag = 'smem constant byte address 0x4 - core index']
  #allocation1 [shape = 'u32[144,128]{1,0:T(1,128)}', space=vmem, size = 0x12000, scoped, tag = 'internal scratch']
  %s0 = inlined_call_operand.vmem [shape: f32[8,32], index: 0, kind: input, shape index: {}]
  %s1 = inlined_call_operand.vmem [shape: f32[32,128], index: 1, kind: input, shape index: {}]
  %s2 = inlined_call_operand.vmem [shape: f32[1,128], index: 2, kind: input, shape index: {}]
  %s3 = inlined_call_operand.vmem [shape: f32[128,16], index: 3, kind: input, shape index: {}]
  %s4 = inlined_call_operand.vmem [shape: f32[1,16], index: 4, kind: input, shape index: {}]
  %s5 = inlined_call_operand.hbm [shape: f32[8,16], index: 5, kind: output, shape index: {}]
  %s6 = sld [smem:[#allocation0]]
  $region30: #{decoder_forward.3} parent=0
    _
  %s8 = ssub.s32 1, %s6
  %s9 = scalar_select 0, %s8, %s6
  $region1: #{decoder_forward.3} parent=0
    #allocation2 [shape = 'u8[4096]{0}', space=vmem, size = 0x1000, scoped, tag = 'output window, operand 0, single buffered']
    #allocation3 [shape = 's32[1]{0}', space=sflag, size = 0x4, scoped, tag = 'scoped memory for decoder_forward.3']
    %10 = vsyncpa [#allocation3], 0
    // Predicated region
    $region2: #{decoder_forward.3} parent=1 // pred_check
      _
    $region3: #{decoder_forward.3} parent=1 // pred_check_branch
      %12 = sbr.rel (0) target = $region5
    $region4: #{decoder_forward.3} parent=1 // pred_region
      _
    $region5: #{decoder_forward.3} parent=1 // pred_fallthru
      _
    // Predicated region
    $region6: #{decoder_forward.3} parent=1 // pred_check
      _
    $region7: #{decoder_forward.3} parent=1 // pred_check_branch
      %14 = sbr.rel (0) target = $region9
    $region8: #{decoder_forward.3} parent=1 // pred_region
      _
    $region9: #{decoder_forward.3} parent=1 // pred_fallthru
      _
    // Predicated region
    $region10: #{decoder_forward.3} parent=1 // pred_check
      _
    $region11: #{decoder_forward.3} parent=1 // pred_check_branch
      %16 = sbr.rel (0) target = $region13
    $region12: #{decoder_forward.3} parent=1 // pred_region
      _
    $region13: #{decoder_forward.3} parent=1 // pred_fallthru
      _
    // Predicated region
    $region14: #{decoder_forward.3} parent=1 // pred_check
      _
    $region15: #{decoder_forward.3} parent=1 // pred_check_branch
      %18 = sbr.rel (0) target = $region17
    $region16: #{decoder_forward.3} parent=1 // pred_region
      _
    $region17: #{decoder_forward.3} parent=1 // pred_fallthru
      _
    // Predicated region
    $region18: #{decoder_forward.3} parent=1 // pred_check
      _
    $region19: #{decoder_forward.3} parent=1 // pred_check_branch
      %20 = sbr.rel (0) target = $region21
    $region20: #{decoder_forward.3} parent=1 // pred_region
      _
    $region21: #{decoder_forward.3} parent=1 // pred_fallthru
      _
    %v21 = vld [vmem:[%s0] sm:$0xff]
    %v22 = vld [vmem:[%s1] sm:$0xff]
    %v23 = vld [vmem:[%s1 + $0x8] sm:$0xff]
    %v24 = vld [vmem:[%s1 + $0x10] sm:$0xff]
    %v25 = vld [vmem:[%s1 + $0x18] sm:$0xff]
    %v26 = vld [vmem:[%s2] sm:$0x1]
    %v28 = vlaneseq
    %v29 = vshrl.u32 %v28, 7
    %v30 = vsub.s32 0, %v29
    %v31 = vrot.slane %v26, %v30
    %vm33 = vcmask 261120
    %v35 = vsel %vm33, %v21, 0
    %37 = vmatprep.subr.mxu0 0.0
    %38 = vmatpush1.msra.mxu0 %v22
    %39 = vmatprep.subr.mxu0 0.0
    %40 = vmatpush1.msra.mxu0 %v23
    %41 = vmatprep.subr.mxu0 0.0
    %42 = vmatpush1.msra.mxu0 %v24
    %43 = vmatprep.subr.mxu0 0.0
    %44 = vmatpush1.msra.mxu0 %v25
    %45 = vmatprep.subr.mxu0 0.0
    %46 = vmatpush1.msra.mxu0 0.0
    %47 = vmatprep.subr.mxu0 0.0
    %48 = vmatpush1.msra.mxu0 0.0
    %49 = vmatprep.subr.mxu0 0.0
    %50 = vmatpush1.msra.mxu0 0.0
    %51 = vmatprep.subr.mxu0 0.0
    %52 = vmatpush1.msra.mxu0 0.0
    %53 = vmatprep.subr.mxu0 0.0
    %54 = vmatpush1.msra.mxu0 0.0
    %55 = vmatprep.subr.mxu0 0.0
    %56 = vmatpush1.msra.mxu0 0.0
    %57 = vmatprep.subr.mxu0 0.0
    %58 = vmatpush1.msra.mxu0 0.0
    %59 = vmatprep.subr.mxu0 0.0
    %60 = vmatpush1.msra.mxu0 0.0
    %61 = vmatprep.subr.mxu0 0.0
    %62 = vmatpush1.msra.mxu0 0.0
    %63 = vmatprep.subr.mxu0 0.0
    %64 = vmatpush1.msra.mxu0 0.0
    %65 = vmatprep.subr.mxu0 0.0
    %66 = vmatpush1.msra.mxu0 0.0
    %67 = vmatprep.subr.mxu0 0.0
    %68 = vmatpush1.msra.mxu0 0.0
    %69 = vmatprep.subr.mxu0 0.0
    %70 = vmatpush1.msra.mxu0 0.0
    %71 = vmatprep.subr.mxu0 0.0
    %72 = vmatpush1.msra.mxu0 0.0
    %73 = vmatprep.subr.mxu0 0.0
    %74 = vmatpush1.msra.mxu0 0.0
    %75 = vmatprep.subr.mxu0 0.0
    %76 = vmatpush1.msra.mxu0 0.0
    %77 = vmatprep.subr.mxu0 0.0
    %78 = vmatpush1.msra.mxu0 0.0
    %79 = vmatprep.subr.mxu0 0.0
    %80 = vmatpush1.msra.mxu0 0.0
    %81 = vmatprep.subr.mxu0 0.0
    %82 = vmatpush1.msra.mxu0 0.0
    %83 = vmatprep.subr.mxu0 0.0
    %84 = vmatpush1.msra.mxu0 0.0
    %85 = vmatprep.subr.mxu0 0.0
    %86 = vmatpush1.msra.mxu0 0.0
    %87 = vmatprep.subr.mxu0 0.0
    %88 = vmatpush1.msra.mxu0 0.0
    %89 = vmatprep.subr.mxu0 0.0
    %90 = vmatpush1.msra.mxu0 0.0
    %91 = vmatprep.subr.mxu0 0.0
    %92 = vmatpush1.msra.mxu0 0.0
    %93 = vmatprep.subr.mxu0 0.0
    %94 = vmatpush1.msra.mxu0 0.0
    %95 = vmatprep.subr.mxu0 0.0
    %96 = vmatpush1.msra.mxu0 0.0
    %97 = vmatprep.subr.mxu0 0.0
    %98 = vmatpush1.msra.mxu0 0.0
    %99 = vmatprep.subr.mxu0 0.0
    %100 = vmatpush1.msra.mxu0 0.0
    %101 = vmatprep.mubr.f32.mxu0 0.0
    %102 = vmatmul.mubr.f32.gmra.mrb[0].mxu0 %v35
    %v103 = vpop.f32.mrb[0].mxu0
    %v104 = vadd.f32 %v31, %v103
    %v105 = vpop.f32.mrb[0].mxu0
    %106 = vdwg.mxu0
    %v107 = vtanh.pop %v104
    %v108 = vld [vmem:[%s3] sm:$0xff]
    %v109 = vld [vmem:[%s3 + $0x8] sm:$0xff]
    %v110 = vld [vmem:[%s3 + $0x10] sm:$0xff]
    %v111 = vld [vmem:[%s3 + $0x18] sm:$0xff]
    %v112 = vld [vmem:[%s3 + $0x20] sm:$0xff]
    %v113 = vld [vmem:[%s3 + $0x28] sm:$0xff]
    %v114 = vld [vmem:[%s3 + $0x30] sm:$0xff]
    %v115 = vld [vmem:[%s3 + $0x38] sm:$0xff]
    %v116 = vld [vmem:[%s3 + $0x40] sm:$0xff]
    %v117 = vld [vmem:[%s3 + $0x48] sm:$0xff]
    %v118 = vld [vmem:[%s3 + $0x50] sm:$0xff]
    %v119 = vld [vmem:[%s3 + $0x58] sm:$0xff]
    %v120 = vld [vmem:[%s3 + $0x60] sm:$0xff]
    %v121 = vld [vmem:[%s3 + $0x68] sm:$0xff]
    %v122 = vld [vmem:[%s3 + $0x70] sm:$0xff]
    %v123 = vld [vmem:[%s3 + $0x78] sm:$0xff]
    %v124 = vld [vmem:[%s4] sm:$0x1]
    %v126 = vlaneseq
    %v127 = vshrl.u32 %v126, 7
    %v128 = vsub.s32 0, %v127
    %v129 = vrot.slane %v124, %v128
    %131 = vmatprep.subr.mxu0 0.0
    %132 = vmatpush1.msra.mxu0 %v108
    %133 = vmatprep.subr.mxu0 0.0
    %134 = vmatpush1.msra.mxu0 %v109
    %135 = vmatprep.subr.mxu0 0.0
    %136 = vmatpush1.msra.mxu0 %v110
    %137 = vmatprep.subr.mxu0 0.0
    %138 = vmatpush1.msra.mxu0 %v111
    %139 = vmatprep.subr.mxu0 0.0
    %140 = vmatpush1.msra.mxu0 %v112
    %141 = vmatprep.subr.mxu0 0.0
    %142 = vmatpush1.msra.mxu0 %v113
    %143 = vmatprep.subr.mxu0 0.0
    %144 = vmatpush1.msra.mxu0 %v114
    %145 = vmatprep.subr.mxu0 0.0
    %146 = vmatpush1.msra.mxu0 %v115
    %147 = vmatprep.subr.mxu0 0.0
    %148 = vmatpush1.msra.mxu0 %v116
    %149 = vmatprep.subr.mxu0 0.0
    %150 = vmatpush1.msra.mxu0 %v117
    %151 = vmatprep.subr.mxu0 0.0
    %152 = vmatpush1.msra.mxu0 %v118
    %153 = vmatprep.subr.mxu0 0.0
    %154 = vmatpush1.msra.mxu0 %v119
    %155 = vmatprep.subr.mxu0 0.0
    %156 = vmatpush1.msra.mxu0 %v120
    %157 = vmatprep.subr.mxu0 0.0
    %158 = vmatpush1.msra.mxu0 %v121
    %159 = vmatprep.subr.mxu0 0.0
    %160 = vmatpush1.msra.mxu0 %v122
    %161 = vmatprep.subr.mxu0 0.0
    %162 = vmatpush1.msra.mxu0 %v123
    %163 = vmatprep.subr.mxu0 0.0
    %164 = vmatpush1.msra.mxu0 0.0
    %165 = vmatprep.subr.mxu0 0.0
    %166 = vmatpush1.msra.mxu0 0.0
    %167 = vmatprep.subr.mxu0 0.0
    %168 = vmatpush1.msra.mxu0 0.0
    %169 = vmatprep.subr.mxu0 0.0
    %170 = vmatpush1.msra.mxu0 0.0
    %171 = vmatprep.subr.mxu0 0.0
    %172 = vmatpush1.msra.mxu0 0.0
    %173 = vmatprep.subr.mxu0 0.0
    %174 = vmatpush1.msra.mxu0 0.0
    %175 = vmatprep.subr.mxu0 0.0
    %176 = vmatpush1.msra.mxu0 0.0
    %177 = vmatprep.subr.mxu0 0.0
    %178 = vmatpush1.msra.mxu0 0.0
    %179 = vmatprep.subr.mxu0 0.0
    %180 = vmatpush1.msra.mxu0 0.0
    %181 = vmatprep.subr.mxu0 0.0
    %182 = vmatpush1.msra.mxu0 0.0
    %183 = vmatprep.subr.mxu0 0.0
    %184 = vmatpush1.msra.mxu0 0.0
    %185 = vmatprep.subr.mxu0 0.0
    %186 = vmatpush1.msra.mxu0 0.0
    %187 = vmatprep.subr.mxu0 0.0
    %188 = vmatpush1.msra.mxu0 0.0
    %189 = vmatprep.subr.mxu0 0.0
    %190 = vmatpush1.msra.mxu0 0.0
    %191 = vmatprep.subr.mxu0 0.0
    %192 = vmatpush1.msra.mxu0 0.0
    %193 = vmatprep.subr.mxu0 0.0
    %194 = vmatpush1.msra.mxu0 0.0
    %195 = vmatprep.mubr.f32.mxu0 0.0
    %196 = vmatmul.mubr.f32.gmra.mrb[0].mxu0 %v107
    %v197 = vpop.f32.mrb[0].mxu0
    %v198 = vadd.f32 %v129, %v197
    %v199 = vpop.f32.mrb[0].mxu0
    %200 = vdwg.mxu0
    %vm201 = vcmask 130048
    %202 = vst.msk [vmem:[#allocation2] sm:$0xff] %vm201, %v198
    // Predicated region
    $region22: #{decoder_forward.3} parent=1 // pred_check
      _
    $region23: #{decoder_forward.3} parent=1 // pred_check_branch
      %204 = sbr.rel (0) target = $region25
    $region24: #{decoder_forward.3} parent=1 // pred_region
      %s206 = ssub.s32 128, 128
      %207 = vsyncadd [#allocation3], %s206
      %s209 = sshll.u32 [#allocation2], 4
      %s210 = int_to_ptr.vmem [resolvable:$true] %s209
      %212 = dma.vmem_to_hbm [thread:$0]  %s210, 128, %s5, [#allocation3]
    $region25: #{decoder_forward.3} parent=1 // pred_fallthru
      _
    // Predicated region
    $region26: #{decoder_forward.3} parent=1 // pred_check
      _
    $region27: #{decoder_forward.3} parent=1 // pred_check_branch
      %214 = sbr.rel (0) target = $region29
    $region28: #{decoder_forward.3} parent=1 // pred_region
      %215 = dma.done [#allocation3], 128
    $region29: #{decoder_forward.3} parent=1 // pred_fallthru
      _
    %216 = vsyncpa [#allocation3], 1

</llo_original>
